<compile_context>
chip_gen: v7x
topology: tpu7x:2x2x1
jax: 0.10.0
libtpu: 0.0.40
codegen_flags: <defaults>
</compile_context>

<pallas_src>
import jax
import jax.numpy as jnp
from jax.experimental import pallas as pl
from jax.experimental.pallas import tpu as pltpu

INPUT_MEAN = (0.2788, 0.2657, 0.2629)
INPUT_STD = (0.2064, 0.1944, 0.2252)

_VMEM_LIMIT = 32 * 1024 * 1024  # ample headroom; safe on v5e / v6e / v7x


# ----------------------------------------------------------------------------
# The single fused Pallas kernel:
#   normalize+conv1+ReLU -> conv2+ReLU -> conv3+ReLU -> avgpool+fc
# expressed as 4 matmuls with fused bias / ReLU, everything in VMEM.
# ----------------------------------------------------------------------------
def _fused_classifier_kernel(x_ref, a1_ref, b1_ref, a2_ref, b2_ref,
                             a3_ref, b3_ref, a4_ref, b4_ref, o_ref):
    h = x_ref[...].astype(jnp.bfloat16)                               # (B, C*H*W)
    # layer 1: per-channel input normalization is folded into a1 / b1
    h = jnp.dot(h, a1_ref[...], preferred_element_type=jnp.float32) + b1_ref[...]
    h = jnp.maximum(h, 0.0).astype(jnp.bfloat16)
    # layer 2
    h = jnp.dot(h, a2_ref[...], preferred_element_type=jnp.float32) + b2_ref[...]
    h = jnp.maximum(h, 0.0).astype(jnp.bfloat16)
    # layer 3
    h = jnp.dot(h, a3_ref[...], preferred_element_type=jnp.float32) + b3_ref[...]
    h = jnp.maximum(h, 0.0).astype(jnp.bfloat16)
    # global average pool + fc (merged, linear)
    logits = jnp.dot(h, a4_ref[...], preferred_element_type=jnp.float32) + b4_ref[...]
    o_ref[...] = logits.astype(o_ref.dtype)


def classifier_forward(prepped, x_nchw):
    """(B, C, H, W) image -> (B, num_classes) logits.  One pallas_call."""
    B = x_nchw.shape[0]
    num_classes = prepped["b4"].shape[-1]
    x_flat = x_nchw.astype(jnp.float32).reshape(B, -1)   # NCHW flatten [c, h, w]
    return pl.pallas_call(
        _fused_classifier_kernel,
        out_shape=jax.ShapeDtypeStruct((B, num_classes), jnp.float32),
        compiler_params=pltpu.CompilerParams(vmem_limit_bytes=_VMEM_LIMIT),
    )(x_flat,
      prepped["A1"], prepped["b1"],
      prepped["A2"], prepped["b2"],
      prepped["A3"], prepped["b3"],
      prepped["A4"], prepped["b4"])


# ----------------------------------------------------------------------------
# Parameter preprocessing (runs ONCE at init, outside the kernel): turn each
# fixed-size affine block of the network into a dense (in, out) matrix + bias.
# ----------------------------------------------------------------------------
def _affine_to_matrix(fn, in_dim):
    """fn: (N, in_dim) -> (N, out_dim), affine.  Returns (A, c): fn(x) = x@A + c."""
    c = fn(jnp.zeros((1, in_dim), jnp.float32))[0]
    A = fn(jnp.eye(in_dim, dtype=jnp.float32)) - c[None, :]
    return A, c


def _conv_block_fn(w, b, cin, h, wd, stride=2, padding=1, mean=None, std=None):
    """Batched flattened (NCHW) conv block, optionally with input normalization."""
    def fn(x_flat):
        x = x_flat.reshape(-1, cin, h, wd)
        if mean is not None:
            x = (x - mean.reshape(1, -1, 1, 1)) / std.reshape(1, -1, 1, 1)
        y = jax.lax.conv_general_dilated(
            x, w, window_strides=(stride, stride),
            padding=((padding, padding), (padding, padding)),
            dimension_numbers=("NCHW", "OIHW", "NCHW"))
        y = y + b.reshape(1, -1, 1, 1)
        return y.reshape(y.shape[0], -1)
    return fn


def _out_size(n, k=3, s=2, p=1):
    return (n + 2 * p - k) // s + 1


def prepare_params(raw, height, width):
    """Precompute the per-layer affine matrices consumed by the fused kernel."""
    cin = raw["conv1_w"].shape[1]
    c1 = raw["conv1_w"].shape[0]
    c2 = raw["conv2_w"].shape[0]
    c3 = raw["conv3_w"].shape[0]
    h1, w1 = _out_size(height), _out_size(width)
    h2, w2 = _out_size(h1), _out_size(w1)
    h3, w3 = _out_size(h2), _out_size(w2)

    A1, o1 = _affine_to_matrix(
        _conv_block_fn(raw["conv1_w"], raw["conv1_b"], cin, height, width,
                       mean=raw["input_mean"], std=raw["input_std"]),
        cin * height * width)
    A2, o2 = _affine_to_matrix(
        _conv_block_fn(raw["conv2_w"], raw["conv2_b"], c1, h1, w1), c1 * h1 * w1)
    A3, o3 = _affine_to_matrix(
        _conv_block_fn(raw["conv3_w"], raw["conv3_b"], c2, h2, w2), c2 * h2 * w2)

    def head_fn(x_flat):                                    # avgpool + fc (linear)
        x = x_flat.reshape(-1, c3, h3, w3)
        pooled = x.mean(axis=(2, 3))
        return pooled @ raw["fc_w"].T + raw["fc_b"]

    A4, o4 = _affine_to_matrix(head_fn, c3 * h3 * w3)

    def pack(A, c):
        return A.astype(jnp.bfloat16), c.reshape(1, -1).astype(jnp.float32)

    p = {}
    p["A1"], p["b1"] = pack(A1, o1)
    p["A2"], p["b2"] = pack(A2, o2)
    p["A3"], p["b3"] = pack(A3, o3)
    p["A4"], p["b4"] = pack(A4, o4)
    return p


# ----------------------------------------------------------------------------
# Raw parameters (deterministic synthetic init, PyTorch layouts).
# ----------------------------------------------------------------------------
def init_raw_params(key, in_channels=3, num_classes=6):
    ks = jax.random.split(key, 8)

    def w(k, shape, fan_in):
        return jax.random.normal(k, shape, jnp.float32) / jnp.sqrt(fan_in)

    p = {}
    p["conv1_w"] = w(ks[0], (4, in_channels, 3, 3), in_channels * 9)
    p["conv1_b"] = w(ks[1], (4,), in_channels * 9)
    p["conv2_w"] = w(ks[2], (8, 4, 3, 3), 4 * 9)
    p["conv2_b"] = w(ks[3], (8,), 4 * 9)
    p["conv3_w"] = w(ks[4], (16, 8, 3, 3), 8 * 9)
    p["conv3_b"] = w(ks[5], (16,), 8 * 9)
    p["fc_w"] = w(ks[6], (num_classes, 16), 16)    # Linear (out_features, in_features)
    p["fc_b"] = w(ks[7], (num_classes,), 16)
    p["input_mean"] = jnp.asarray(INPUT_MEAN, jnp.float32)
    p["input_std"] = jnp.asarray(INPUT_STD, jnp.float32)
    return p


# Plain-XLA reference (in-script numerical sanity check only).
def reference_forward(raw, x_nchw):
    mean = raw["input_mean"].reshape(1, -1, 1, 1)
    std = raw["input_std"].reshape(1, -1, 1, 1)
    z = (x_nchw - mean) / std

    def conv(x, w, b):
        y = jax.lax.conv_general_dilated(
            x, w, window_strides=(2, 2), padding=((1, 1), (1, 1)),
            dimension_numbers=("NCHW", "OIHW", "NCHW"))
        return jax.nn.relu(y + b.reshape(1, -1, 1, 1))

    h = conv(z, raw["conv1_w"], raw["conv1_b"])
    h = conv(h, raw["conv2_w"], raw["conv2_b"])
    h = conv(h, raw["conv3_w"], raw["conv3_b"])
    pooled = h.mean(axis=(2, 3))
    return pooled @ raw["fc_w"].T + raw["fc_b"]


if __name__ == "__main__":
    key = jax.random.PRNGKey(0)
    pkey, xkey = jax.random.split(key)
    raw = init_raw_params(pkey, in_channels=3, num_classes=6)

    # Small input consistent with the module: batch=2, channels=3, 16x16.
    x = jax.random.normal(xkey, (2, 3, 16, 16), jnp.float32)

    prepped = prepare_params(raw, height=16, width=16)

    fwd = jax.jit(classifier_forward)
    logits = fwd(prepped, x)
    jax.block_until_ready(logits)

    assert logits.shape == (2, 6), logits.shape
    assert logits.dtype == jnp.float32

    # Sanity check against plain-XLA reference (loose tolerance: bf16 operands).
    ref = reference_forward(raw, x)
    max_err = float(jnp.max(jnp.abs(logits - ref)))
    tol = 0.1 * float(jnp.max(jnp.abs(ref))) + 0.1
    assert max_err < tol, (max_err, tol)

    print("KERNEL_OK")
</pallas_src>

<mosaic_0001>
module attributes {stable_mosaic.version = 11 : i64} {
  func.func @_fused_classifier_kernel(%arg0: memref<2x768xf32, #tpu.memory_space<vmem>>, %arg1: memref<768x256xbf16, #tpu.memory_space<vmem>>, %arg2: memref<1x256xf32, #tpu.memory_space<vmem>>, %arg3: memref<256x128xbf16, #tpu.memory_space<vmem>>, %arg4: memref<1x128xf32, #tpu.memory_space<vmem>>, %arg5: memref<128x64xbf16, #tpu.memory_space<vmem>>, %arg6: memref<1x64xf32, #tpu.memory_space<vmem>>, %arg7: memref<64x6xbf16, #tpu.memory_space<vmem>>, %arg8: memref<1x6xf32, #tpu.memory_space<vmem>>, %arg9: memref<2x6xf32, #tpu.memory_space<vmem>>) attributes {dimension_semantics = [], scalar_prefetch = 0 : i64, scratch_operands = 0 : i64, tpu.core_type = #tpu.core_type<tc>} {
    %c0 = arith.constant 0 : index
    %c0_0 = arith.constant 0 : index
    %0 = vector.load %arg0[%c0, %c0_0] : memref<2x768xf32, #tpu.memory_space<vmem>>, vector<2x768xf32>
    %1 = arith.truncf %0 : vector<2x768xf32> to vector<2x768xbf16>
    %c0_1 = arith.constant 0 : index
    %c0_2 = arith.constant 0 : index
    %2 = vector.load %arg1[%c0_1, %c0_2] : memref<768x256xbf16, #tpu.memory_space<vmem>>, vector<768x256xbf16>
    %cst = arith.constant dense<0.000000e+00> : vector<2x256xf32>
    %3 = tpu.matmul %1, %2, %cst {dimension_numbers = #tpu.dot_dimension_numbers<[1], [0], [0], [1], [0, 0, 1, 1], [], []>} : vector<2x768xbf16>, vector<768x256xbf16>, vector<2x256xf32> -> vector<2x256xf32>
    %c0_3 = arith.constant 0 : index
    %c0_4 = arith.constant 0 : index
    %4 = vector.load %arg2[%c0_3, %c0_4] : memref<1x256xf32, #tpu.memory_space<vmem>>, vector<1x256xf32>
    %5 = vector.broadcast %4 : vector<1x256xf32> to vector<2x256xf32>
    %6 = arith.addf %3, %5 : vector<2x256xf32>
    %cst_5 = arith.constant 0.000000e+00 : f32
    %7 = vector.broadcast %cst_5 : f32 to vector<2x256xf32>
    %8 = arith.maximumf %6, %7 : vector<2x256xf32>
    %9 = arith.truncf %8 : vector<2x256xf32> to vector<2x256xbf16>
    %c0_6 = arith.constant 0 : index
    %c0_7 = arith.constant 0 : index
    %10 = vector.load %arg3[%c0_6, %c0_7] : memref<256x128xbf16, #tpu.memory_space<vmem>>, vector<256x128xbf16>
    %cst_8 = arith.constant dense<0.000000e+00> : vector<2x128xf32>
    %11 = tpu.matmul %9, %10, %cst_8 {dimension_numbers = #tpu.dot_dimension_numbers<[1], [0], [0], [1], [0, 0, 1, 1], [], []>} : vector<2x256xbf16>, vector<256x128xbf16>, vector<2x128xf32> -> vector<2x128xf32>
    %c0_9 = arith.constant 0 : index
    %c0_10 = arith.constant 0 : index
    %12 = vector.load %arg4[%c0_9, %c0_10] : memref<1x128xf32, #tpu.memory_space<vmem>>, vector<1x128xf32>
    %13 = vector.broadcast %12 : vector<1x128xf32> to vector<2x128xf32>
    %14 = arith.addf %11, %13 : vector<2x128xf32>
    %cst_11 = arith.constant 0.000000e+00 : f32
    %15 = vector.broadcast %cst_11 : f32 to vector<2x128xf32>
    %16 = arith.maximumf %14, %15 : vector<2x128xf32>
    %17 = arith.truncf %16 : vector<2x128xf32> to vector<2x128xbf16>
    %c0_12 = arith.constant 0 : index
    %c0_13 = arith.constant 0 : index
    %18 = vector.load %arg5[%c0_12, %c0_13] : memref<128x64xbf16, #tpu.memory_space<vmem>>, vector<128x64xbf16>
    %cst_14 = arith.constant dense<0.000000e+00> : vector<2x64xf32>
    %19 = tpu.matmul %17, %18, %cst_14 {dimension_numbers = #tpu.dot_dimension_numbers<[1], [0], [0], [1], [0, 0, 1, 1], [], []>} : vector<2x128xbf16>, vector<128x64xbf16>, vector<2x64xf32> -> vector<2x64xf32>
    %c0_15 = arith.constant 0 : index
    %c0_16 = arith.constant 0 : index
    %20 = vector.load %arg6[%c0_15, %c0_16] : memref<1x64xf32, #tpu.memory_space<vmem>>, vector<1x64xf32>
    %21 = vector.broadcast %20 : vector<1x64xf32> to vector<2x64xf32>
    %22 = arith.addf %19, %21 : vector<2x64xf32>
    %cst_17 = arith.constant 0.000000e+00 : f32
    %23 = vector.broadcast %cst_17 : f32 to vector<2x64xf32>
    %24 = arith.maximumf %22, %23 : vector<2x64xf32>
    %25 = arith.truncf %24 : vector<2x64xf32> to vector<2x64xbf16>
    %c0_18 = arith.constant 0 : index
    %c0_19 = arith.constant 0 : index
    %26 = vector.load %arg7[%c0_18, %c0_19] : memref<64x6xbf16, #tpu.memory_space<vmem>>, vector<64x6xbf16>
    %cst_20 = arith.constant dense<0.000000e+00> : vector<2x6xf32>
    %27 = tpu.matmul %25, %26, %cst_20 {dimension_numbers = #tpu.dot_dimension_numbers<[1], [0], [0], [1], [0, 0, 1, 1], [], []>} : vector<2x64xbf16>, vector<64x6xbf16>, vector<2x6xf32> -> vector<2x6xf32>
    %c0_21 = arith.constant 0 : index
    %c0_22 = arith.constant 0 : index
    %28 = vector.load %arg8[%c0_21, %c0_22] : memref<1x6xf32, #tpu.memory_space<vmem>>, vector<1x6xf32>
    %29 = vector.broadcast %28 : vector<1x6xf32> to vector<2x6xf32>
    %30 = arith.addf %27, %29 : vector<2x6xf32>
    %c0_23 = arith.constant 0 : index
    %c0_24 = arith.constant 0 : index
    %31 = vector.load %arg9[%c0_23, %c0_24] : memref<2x6xf32, #tpu.memory_space<vmem>>, vector<2x6xf32>
    tpu.vector_store %arg9[%c0_23, %c0_24], %30 {strides = array<i32>} : memref<2x6xf32, #tpu.memory_space<vmem>>, vector<2x6xf32>,
    return
  }
}

</mosaic_0001>

<llo_original>
// kernel: classifier_forward.1
$region0: #{classifier_forward.1}
  #allocation0 [shape = 'u32[]', space=smem, size = 0x4, offset = 0x4, fixed_abs, tag = 'smem constant byte address 0x4 - core index']
  #allocation1 [shape = 'u32[144,128]{1,0:T(1,128)}', space=vmem, size = 0x12000, scoped, tag = 'internal scratch']
  %s0 = inlined_call_operand.vmem [shape: f32[2,768], index: 0, kind: input, shape index: {}]
  %s1 = inlined_call_operand.hbm [shape: bf16[768,256], index: 1, kind: input, shape index: {}]
  %s2 = inlined_call_operand.vmem [shape: f32[1,256], index: 2, kind: input, shape index: {}]
  %s3 = inlined_call_operand.vmem [shape: bf16[256,128], index: 3, kind: input, shape index: {}]
  %s4 = inlined_call_operand.vmem [shape: f32[1,128], index: 4, kind: input, shape index: {}]
  %s5 = inlined_call_operand.vmem [shape: bf16[128,64], index: 5, kind: input, shape index: {}]
  %s6 = inlined_call_operand.vmem [shape: f32[1,64], index: 6, kind: input, shape index: {}]
  %s7 = inlined_call_operand.vmem [shape: bf16[64,6], index: 7, kind: input, shape index: {}]
  %s8 = inlined_call_operand.vmem [shape: f32[1,6], index: 8, kind: input, shape index: {}]
  %s9 = inlined_call_operand.hbm [shape: f32[2,6], index: 9, kind: output, shape index: {}]
  %s10 = sld [smem:[#allocation0]]
  $region50: #{classifier_forward.1} parent=0
    _
  %s12 = ssub.s32 1, %s10
  %s13 = scalar_select 0, %s12, %s10
  $region1: #{classifier_forward.1} parent=0
    #allocation2 [shape = 'u8[393216]{0}', space=vmem, size = 0x60000, scoped, tag = 'input window, operand 1, single buffered']
    #allocation3 [shape = 's32[1]{0}', space=sflag, size = 0x4, scoped, tag = 'scoped memory for classifier_forward.1']
    #allocation4 [shape = 's32[1]{0}', space=sflag, size = 0x4, scoped, tag = 'scoped memory for classifier_forward.1']
    #allocation5 [shape = 'u8[1024]{0}', space=vmem, size = 0x400, scoped, tag = 'output window, operand 0, single buffered']
    %14 = vsyncpa [#allocation3], 0
    %15 = vsyncpa [#allocation4], 0
    // Predicated region
    $region2: #{classifier_forward.1} parent=1 // pred_check
      _
    $region3: #{classifier_forward.1} parent=1 // pred_check_branch
      %17 = sbr.rel (0) target = $region5
    $region4: #{classifier_forward.1} parent=1 // pred_region
      _
    $region5: #{classifier_forward.1} parent=1 // pred_fallthru
      _
    // Predicated region
    $region6: #{classifier_forward.1} parent=1 // pred_check
      _
    $region7: #{classifier_forward.1} parent=1 // pred_check_branch
      %19 = sbr.rel (0) target = $region9
    $region8: #{classifier_forward.1} parent=1 // pred_region
      %s21 = ssub.s32 12288, 12288
      %22 = vsyncadd [#allocation3], %s21
      %s23 = sshll.u32 [#allocation2], 4
      %s24 = int_to_ptr.vmem [resolvable:$true] %s23
      %29 = dma.hbm_to_vmem [thread:$0]  %s1, 12288, %s24, [#allocation3], 128, 128, 8
    $region9: #{classifier_forward.1} parent=1 // pred_fallthru
      _
    // Predicated region
    $region10: #{classifier_forward.1} parent=1 // pred_check
      _
    $region11: #{classifier_forward.1} parent=1 // pred_check_branch
      %31 = sbr.rel (0) target = $region13
    $region12: #{classifier_forward.1} parent=1 // pred_region
      _
    $region13: #{classifier_forward.1} parent=1 // pred_fallthru
      _
    // Predicated region
    $region14: #{classifier_forward.1} parent=1 // pred_check
      _
    $region15: #{classifier_forward.1} parent=1 // pred_check_branch
      %33 = sbr.rel (0) target = $region17
    $region16: #{classifier_forward.1} parent=1 // pred_region
      _
    $region17: #{classifier_forward.1} parent=1 // pred_fallthru
      _
    // Predicated region
    $region18: #{classifier_forward.1} parent=1 // pred_check
      _
    $region19: #{classifier_forward.1} parent=1 // pred_check_branch
      %35 = sbr.rel (0) target = $region21
    $region20: #{classifier_forward.1} parent=1 // pred_region
      _
    $region21: #{classifier_forward.1} parent=1 // pred_fallthru
      _
    // Predicated region
    $region22: #{classifier_forward.1} parent=1 // pred_check
      _
    $region23: #{classifier_forward.1} parent=1 // pred_check_branch
      %37 = sbr.rel (0) target = $region25
    $region24: #{classifier_forward.1} parent=1 // pred_region
      _
    $region25: #{classifier_forward.1} parent=1 // pred_fallthru
      _
    // Predicated region
    $region26: #{classifier_forward.1} parent=1 // pred_check
      _
    $region27: #{classifier_forward.1} parent=1 // pred_check_branch
      %39 = sbr.rel (0) target = $region29
    $region28: #{classifier_forward.1} parent=1 // pred_region
      _
    $region29: #{classifier_forward.1} parent=1 // pred_fallthru
      _
    // Predicated region
    $region30: #{classifier_forward.1} parent=1 // pred_check
      _
    $region31: #{classifier_forward.1} parent=1 // pred_check_branch
      %41 = sbr.rel (0) target = $region33
    $region32: #{classifier_forward.1} parent=1 // pred_region
      _
    $region33: #{classifier_forward.1} parent=1 // pred_fallthru
      _
    // Predicated region
    $region34: #{classifier_forward.1} parent=1 // pred_check
      _
    $region35: #{classifier_forward.1} parent=1 // pred_check_branch
      %43 = sbr.rel (0) target = $region37
    $region36: #{classifier_forward.1} parent=1 // pred_region
      _
    $region37: #{classifier_forward.1} parent=1 // pred_fallthru
      _
    // Predicated region
    $region38: #{classifier_forward.1} parent=1 // pred_check
      _
    $region39: #{classifier_forward.1} parent=1 // pred_check_branch
      %45 = sbr.rel (0) target = $region41
    $region40: #{classifier_forward.1} parent=1 // pred_region
      %46 = dma.done [#allocation3], 12288
    $region41: #{classifier_forward.1} parent=1 // pred_fallthru
      _
    %v48 = vld [vmem:[%s0] sm:$0xff]
    %v49 = vld [vmem:[%s0 + $0x8] sm:$0xf]
    %v52 = vcombine.high %v48, %v48
    %v54 = vunpack.c.l.s4 1983009808
    %v55 = vunpack.c.0.s8 %v54
    %v56 = vlaneseq
    %v57 = vshrl.u32 %v56, 7
    %v58 = vsub.s32 %v55, %v57
    %v59 = vrot.slane %v48, %v58
    %v61 = vunpack.c.l.s4 1983009808
    %v62 = vunpack.c.0.s8 %v61
    %v63 = vlaneseq
    %v64 = vshrl.u32 %v63, 7
    %v65 = vsub.s32 %v62, %v64
    %v66 = vrot.slane %v52, %v65
    %v67 = vcombine.high %v59, %v59
    %v68 = vcombine.high %v66, %v66
    %v70 = vunpack.c.l.s4 1983009808
    %v71 = vunpack.c.0.s8 %v70
    %v72 = vlaneseq
    %v73 = vshrl.u32 %v72, 7
    %v74 = vsub.s32 %v71, %v73
    %v75 = vrot.slane %v49, %v74
    %v76 = vcombine.high %v75, %v75
    %v83 = vpack.c.bf16 %v59, %v59
    %v84 = vpack.c.bf16 %v67, %v67
    %v85 = vpack.c.bf16 %v66, %v66
    %v86 = vpack.c.bf16 %v68, %v68
    %v87 = vpack.c.bf16 %v75, %v75
    %v88 = vpack.c.bf16 %v76, %v76
    %v89 = vld [vmem:[#allocation2] sm:$0xff]
    %v90 = vld [vmem:[#allocation2 + $0x8] sm:$0xff]
    %v91 = vld [vmem:[#allocation2 + $0x10] sm:$0xff]
    %v92 = vld [vmem:[#allocation2 + $0x18] sm:$0xff]
    %v93 = vld [vmem:[#allocation2 + $0x20] sm:$0xff]
    %v94 = vld [vmem:[#allocation2 + $0x28] sm:$0xff]
    %v95 = vld [vmem:[#allocation2 + $0x30] sm:$0xff]
    %v96 = vld [vmem:[#allocation2 + $0x38] sm:$0xff]
    %v97 = vld [vmem:[#allocation2 + $0x40] sm:$0xff]
    %v98 = vld [vmem:[#allocation2 + $0x48] sm:$0xff]
    %v99 = vld [vmem:[#allocation2 + $0x50] sm:$0xff]
    %v100 = vld [vmem:[#allocation2 + $0x58] sm:$0xff]
    %v101 = vld [vmem:[#allocation2 + $0x60] sm:$0xff]
    %v102 = vld [vmem:[#allocation2 + $0x68] sm:$0xff]
    %v103 = vld [vmem:[#allocation2 + $0x70] sm:$0xff]
    %v104 = vld [vmem:[#allocation2 + $0x78] sm:$0xff]
    %v105 = vld [vmem:[#allocation2 + $0x80] sm:$0xff]
    %v106 = vld [vmem:[#allocation2 + $0x88] sm:$0xff]
    %v107 = vld [vmem:[#allocation2 + $0x90] sm:$0xff]
    %v108 = vld [vmem:[#allocation2 + $0x98] sm:$0xff]
    %v109 = vld [vmem:[#allocation2 + $0xa0] sm:$0xff]
    %v110 = vld [vmem:[#allocation2 + $0xa8] sm:$0xff]
    %v111 = vld [vmem:[#allocation2 + $0xb0] sm:$0xff]
    %v112 = vld [vmem:[#allocation2 + $0xb8] sm:$0xff]
    %v113 = vld [vmem:[#allocation2 + $0xc0] sm:$0xff]
    %v114 = vld [vmem:[#allocation2 + $0xc8] sm:$0xff]
    %v115 = vld [vmem:[#allocation2 + $0xd0] sm:$0xff]
    %v116 = vld [vmem:[#allocation2 + $0xd8] sm:$0xff]
    %v117 = vld [vmem:[#allocation2 + $0xe0] sm:$0xff]
    %v118 = vld [vmem:[#allocation2 + $0xe8] sm:$0xff]
    %v119 = vld [vmem:[#allocation2 + $0xf0] sm:$0xff]
    %v120 = vld [vmem:[#allocation2 + $0xf8] sm:$0xff]
    %v121 = vld [vmem:[#allocation2 + $0x100] sm:$0xff]
    %v122 = vld [vmem:[#allocation2 + $0x108] sm:$0xff]
    %v123 = vld [vmem:[#allocation2 + $0x110] sm:$0xff]
    %v124 = vld [vmem:[#allocation2 + $0x118] sm:$0xff]
    %v125 = vld [vmem:[#allocation2 + $0x120] sm:$0xff]
    %v126 = vld [vmem:[#allocation2 + $0x128] sm:$0xff]
    %v127 = vld [vmem:[#allocation2 + $0x130] sm:$0xff]
    %v128 = vld [vmem:[#allocation2 + $0x138] sm:$0xff]
    %v129 = vld [vmem:[#allocation2 + $0x140] sm:$0xff]
    %v130 = vld [vmem:[#allocation2 + $0x148] sm:$0xff]
    %v131 = vld [vmem:[#allocation2 + $0x150] sm:$0xff]
    %v132 = vld [vmem:[#allocation2 + $0x158] sm:$0xff]
    %v133 = vld [vmem:[#allocation2 + $0x160] sm:$0xff]
    %v134 = vld [vmem:[#allocation2 + $0x168] sm:$0xff]
    %v135 = vld [vmem:[#allocation2 + $0x170] sm:$0xff]
    %v136 = vld [vmem:[#allocation2 + $0x178] sm:$0xff]
    %v137 = vld [vmem:[#allocation2 + $0x180] sm:$0xff]
    %v138 = vld [vmem:[#allocation2 + $0x188] sm:$0xff]
    %v139 = vld [vmem:[#allocation2 + $0x190] sm:$0xff]
    %v140 = vld [vmem:[#allocation2 + $0x198] sm:$0xff]
    %v141 = vld [vmem:[#allocation2 + $0x1a0] sm:$0xff]
    %v142 = vld [vmem:[#allocation2 + $0x1a8] sm:$0xff]
    %v143 = vld [vmem:[#allocation2 + $0x1b0] sm:$0xff]
    %v144 = vld [vmem:[#allocation2 + $0x1b8] sm:$0xff]
    %v145 = vld [vmem:[#allocation2 + $0x1c0] sm:$0xff]
    %v146 = vld [vmem:[#allocation2 + $0x1c8] sm:$0xff]
    %v147 = vld [vmem:[#allocation2 + $0x1d0] sm:$0xff]
    %v148 = vld [vmem:[#allocation2 + $0x1d8] sm:$0xff]
    %v149 = vld [vmem:[#allocation2 + $0x1e0] sm:$0xff]
    %v150 = vld [vmem:[#allocation2 + $0x1e8] sm:$0xff]
    %v151 = vld [vmem:[#allocation2 + $0x1f0] sm:$0xff]
    %v152 = vld [vmem:[#allocation2 + $0x1f8] sm:$0xff]
    %v153 = vld [vmem:[#allocation2 + $0x200] sm:$0xff]
    %v154 = vld [vmem:[#allocation2 + $0x208] sm:$0xff]
    %v155 = vld [vmem:[#allocation2 + $0x210] sm:$0xff]
    %v156 = vld [vmem:[#allocation2 + $0x218] sm:$0xff]
    %v157 = vld [vmem:[#allocation2 + $0x220] sm:$0xff]
    %v158 = vld [vmem:[#allocation2 + $0x228] sm:$0xff]
    %v159 = vld [vmem:[#allocation2 + $0x230] sm:$0xff]
    %v160 = vld [vmem:[#allocation2 + $0x238] sm:$0xff]
    %v161 = vld [vmem:[#allocation2 + $0x240] sm:$0xff]
    %v162 = vld [vmem:[#allocation2 + $0x248] sm:$0xff]
    %v163 = vld [vmem:[#allocation2 + $0x250] sm:$0xff]
    %v164 = vld [vmem:[#allocation2 + $0x258] sm:$0xff]
    %v165 = vld [vmem:[#allocation2 + $0x260] sm:$0xff]
    %v166 = vld [vmem:[#allocation2 + $0x268] sm:$0xff]
    %v167 = vld [vmem:[#allocation2 + $0x270] sm:$0xff]
    %v168 = vld [vmem:[#allocation2 + $0x278] sm:$0xff]
    %v169 = vld [vmem:[#allocation2 + $0x280] sm:$0xff]
    %v170 = vld [vmem:[#allocation2 + $0x288] sm:$0xff]
    %v171 = vld [vmem:[#allocation2 + $0x290] sm:$0xff]
    %v172 = vld [vmem:[#allocation2 + $0x298] sm:$0xff]
    %v173 = vld [vmem:[#allocation2 + $0x2a0] sm:$0xff]
    %v174 = vld [vmem:[#allocation2 + $0x2a8] sm:$0xff]
    %v175 = vld [vmem:[#allocation2 + $0x2b0] sm:$0xff]
    %v176 = vld [vmem:[#allocation2 + $0x2b8] sm:$0xff]
    %v177 = vld [vmem:[#allocation2 + $0x2c0] sm:$0xff]
    %v178 = vld [vmem:[#allocation2 + $0x2c8] sm:$0xff]
    %v179 = vld [vmem:[#allocation2 + $0x2d0] sm:$0xff]
    %v180 = vld [vmem:[#allocation2 + $0x2d8] sm:$0xff]
    %v181 = vld [vmem:[#allocation2 + $0x2e0] sm:$0xff]
    %v182 = vld [vmem:[#allocation2 + $0x2e8] sm:$0xff]
    %v183 = vld [vmem:[#allocation2 + $0x2f0] sm:$0xff]
    %v184 = vld [vmem:[#allocation2 + $0x2f8] sm:$0xff]
    %v185 = vld [vmem:[%s2] sm:$0x3]
    %v187 = vlaneseq
    %v188 = vshrl.u32 %v187, 7
    %v189 = vsub.s32 0, %v188
    %v190 = vrot.slane %v185, %v189
    %v191 = vlaneseq
    %v192 = vshrl.u32 %v191, 7
    %v193 = vsub.s32 1, %v192
    %v194 = vrot.slane %v185, %v193
    %v293 = vunpack.c.l.b16 %v89
    %v294 = vunpack.c.h.b16 %v89
    %v295 = vunpack.c.l.b16 %v90
    %v296 = vunpack.c.h.b16 %v90
    %v297 = vunpack.c.l.b16 %v91
    %v298 = vunpack.c.h.b16 %v91
    %v299 = vunpack.c.l.b16 %v92
    %v300 = vunpack.c.h.b16 %v92
    %v301 = vunpack.c.l.b16 %v93
    %v302 = vunpack.c.h.b16 %v93
    %v303 = vunpack.c.l.b16 %v94
    %v304 = vunpack.c.h.b16 %v94
    %v305 = vunpack.c.l.b16 %v95
    %v306 = vunpack.c.h.b16 %v95
    %v307 = vunpack.c.l.b16 %v96
    %v308 = vunpack.c.h.b16 %v96
    %v309 = vunpack.c.l.b16 %v97
    %v310 = vunpack.c.h.b16 %v97
    %v311 = vunpack.c.l.b16 %v98
    %v312 = vunpack.c.h.b16 %v98
    %v313 = vunpack.c.l.b16 %v99
    %v314 = vunpack.c.h.b16 %v99
    %v315 = vunpack.c.l.b16 %v100
    %v316 = vunpack.c.h.b16 %v100
    %v317 = vunpack.c.l.b16 %v101
    %v318 = vunpack.c.h.b16 %v101
    %v319 = vunpack.c.l.b16 %v102
    %v320 = vunpack.c.h.b16 %v102
    %v321 = vunpack.c.l.b16 %v103
    %v322 = vunpack.c.h.b16 %v103
    %v323 = vunpack.c.l.b16 %v104
    %v324 = vunpack.c.h.b16 %v104
    %v325 = vunpack.c.l.b16 %v105
    %v326 = vunpack.c.h.b16 %v105
    %v327 = vunpack.c.l.b16 %v106
    %v328 = vunpack.c.h.b16 %v106
    %v329 = vunpack.c.l.b16 %v107
    %v330 = vunpack.c.h.b16 %v107
    %v331 = vunpack.c.l.b16 %v108
    %v332 = vunpack.c.h.b16 %v108
    %v333 = vunpack.c.l.b16 %v109
    %v334 = vunpack.c.h.b16 %v109
    %v335 = vunpack.c.l.b16 %v110
    %v336 = vunpack.c.h.b16 %v110
    %v337 = vunpack.c.l.b16 %v111
    %v338 = vunpack.c.h.b16 %v111
    %v339 = vunpack.c.l.b16 %v112
    %v340 = vunpack.c.h.b16 %v112
    %v341 = vunpack.c.l.b16 %v113
    %v342 = vunpack.c.h.b16 %v113
    %v343 = vunpack.c.l.b16 %v114
    %v344 = vunpack.c.h.b16 %v114
    %v345 = vunpack.c.l.b16 %v115
    %v346 = vunpack.c.h.b16 %v115
    %v347 = vunpack.c.l.b16 %v116
    %v348 = vunpack.c.h.b16 %v116
    %v349 = vunpack.c.l.b16 %v117
    %v350 = vunpack.c.h.b16 %v117
    %v351 = vunpack.c.l.b16 %v118
    %v352 = vunpack.c.h.b16 %v118
    %v353 = vunpack.c.l.b16 %v119
    %v354 = vunpack.c.h.b16 %v119
    %v355 = vunpack.c.l.b16 %v120
    %v356 = vunpack.c.h.b16 %v120
    %v357 = vunpack.c.l.b16 %v121
    %v358 = vunpack.c.h.b16 %v121
    %v359 = vunpack.c.l.b16 %v122
    %v360 = vunpack.c.h.b16 %v122
    %v361 = vunpack.c.l.b16 %v123
    %v362 = vunpack.c.h.b16 %v123
    %v363 = vunpack.c.l.b16 %v124
    %v364 = vunpack.c.h.b16 %v124
    %v365 = vunpack.c.l.b16 %v125
    %v366 = vunpack.c.h.b16 %v125
    %v367 = vunpack.c.l.b16 %v126
    %v368 = vunpack.c.h.b16 %v126
    %v369 = vunpack.c.l.b16 %v127
    %v370 = vunpack.c.h.b16 %v127
    %v371 = vunpack.c.l.b16 %v128
    %v372 = vunpack.c.h.b16 %v128
    %v373 = vunpack.c.l.b16 %v129
    %v374 = vunpack.c.h.b16 %v129
    %v375 = vunpack.c.l.b16 %v130
    %v376 = vunpack.c.h.b16 %v130
    %v377 = vunpack.c.l.b16 %v131
    %v378 = vunpack.c.h.b16 %v131
    %v379 = vunpack.c.l.b16 %v132
    %v380 = vunpack.c.h.b16 %v132
    %v381 = vunpack.c.l.b16 %v133
    %v382 = vunpack.c.h.b16 %v133
    %v383 = vunpack.c.l.b16 %v134
    %v384 = vunpack.c.h.b16 %v134
    %v385 = vunpack.c.l.b16 %v135
    %v386 = vunpack.c.h.b16 %v135
    %v387 = vunpack.c.l.b16 %v136
    %v388 = vunpack.c.h.b16 %v136
    %v389 = vunpack.c.l.b16 %v137
    %v390 = vunpack.c.h.b16 %v137
    %v391 = vunpack.c.l.b16 %v138
    %v392 = vunpack.c.h.b16 %v138
    %v393 = vunpack.c.l.b16 %v139
    %v394 = vunpack.c.h.b16 %v139
    %v395 = vunpack.c.l.b16 %v140
    %v396 = vunpack.c.h.b16 %v140
    %v397 = vunpack.c.l.b16 %v141
    %v398 = vunpack.c.h.b16 %v141
    %v399 = vunpack.c.l.b16 %v142
    %v400 = vunpack.c.h.b16 %v142
    %v401 = vunpack.c.l.b16 %v143
    %v402 = vunpack.c.h.b16 %v143
    %v403 = vunpack.c.l.b16 %v144
    %v404 = vunpack.c.h.b16 %v144
    %v405 = vunpack.c.l.b16 %v145
    %v406 = vunpack.c.h.b16 %v145
    %v407 = vunpack.c.l.b16 %v146
    %v408 = vunpack.c.h.b16 %v146
    %v409 = vunpack.c.l.b16 %v147
    %v410 = vunpack.c.h.b16 %v147
    %v411 = vunpack.c.l.b16 %v148
    %v412 = vunpack.c.h.b16 %v148
    %v413 = vunpack.c.l.b16 %v149
    %v414 = vunpack.c.h.b16 %v149
    %v415 = vunpack.c.l.b16 %v150
    %v416 = vunpack.c.h.b16 %v150
    %v417 = vunpack.c.l.b16 %v151
    %v418 = vunpack.c.h.b16 %v151
    %v419 = vunpack.c.l.b16 %v152
    %v420 = vunpack.c.h.b16 %v152
    %v421 = vunpack.c.l.b16 %v153
    %v422 = vunpack.c.h.b16 %v153
    %v423 = vunpack.c.l.b16 %v154
    %v424 = vunpack.c.h.b16 %v154
    %v425 = vunpack.c.l.b16 %v155
    %v426 = vunpack.c.h.b16 %v155
    %v427 = vunpack.c.l.b16 %v156
    %v428 = vunpack.c.h.b16 %v156
    %v429 = vunpack.c.l.b16 %v157
    %v430 = vunpack.c.h.b16 %v157
    %v431 = vunpack.c.l.b16 %v158
    %v432 = vunpack.c.h.b16 %v158
    %v433 = vunpack.c.l.b16 %v159
    %v434 = vunpack.c.h.b16 %v159
    %v435 = vunpack.c.l.b16 %v160
    %v436 = vunpack.c.h.b16 %v160
    %v437 = vunpack.c.l.b16 %v161
    %v438 = vunpack.c.h.b16 %v161
    %v439 = vunpack.c.l.b16 %v162
    %v440 = vunpack.c.h.b16 %v162
    %v441 = vunpack.c.l.b16 %v163
    %v442 = vunpack.c.h.b16 %v163
    %v443 = vunpack.c.l.b16 %v164
    %v444 = vunpack.c.h.b16 %v164
    %v445 = vunpack.c.l.b16 %v165
    %v446 = vunpack.c.h.b16 %v165
    %v447 = vunpack.c.l.b16 %v166
    %v448 = vunpack.c.h.b16 %v166
    %v449 = vunpack.c.l.b16 %v167
    %v450 = vunpack.c.h.b16 %v167
    %v451 = vunpack.c.l.b16 %v168
    %v452 = vunpack.c.h.b16 %v168
    %v453 = vunpack.c.l.b16 %v169
    %v454 = vunpack.c.h.b16 %v169
    %v455 = vunpack.c.l.b16 %v170
    %v456 = vunpack.c.h.b16 %v170
    %v457 = vunpack.c.l.b16 %v171
    %v458 = vunpack.c.h.b16 %v171
    %v459 = vunpack.c.l.b16 %v172
    %v460 = vunpack.c.h.b16 %v172
    %v461 = vunpack.c.l.b16 %v173
    %v462 = vunpack.c.h.b16 %v173
    %v463 = vunpack.c.l.b16 %v174
    %v464 = vunpack.c.h.b16 %v174
    %v465 = vunpack.c.l.b16 %v175
    %v466 = vunpack.c.h.b16 %v175
    %v467 = vunpack.c.l.b16 %v176
    %v468 = vunpack.c.h.b16 %v176
    %v469 = vunpack.c.l.b16 %v177
    %v470 = vunpack.c.h.b16 %v177
    %v471 = vunpack.c.l.b16 %v178
    %v472 = vunpack.c.h.b16 %v178
    %v473 = vunpack.c.l.b16 %v179
    %v474 = vunpack.c.h.b16 %v179
    %v475 = vunpack.c.l.b16 %v180
    %v476 = vunpack.c.h.b16 %v180
    %v477 = vunpack.c.l.b16 %v181
    %v478 = vunpack.c.h.b16 %v181
    %v479 = vunpack.c.l.b16 %v182
    %v480 = vunpack.c.h.b16 %v182
    %v481 = vunpack.c.l.b16 %v183
    %v482 = vunpack.c.h.b16 %v183
    %v483 = vunpack.c.l.b16 %v184
    %v484 = vunpack.c.h.b16 %v184
    %v485 = vpack.c.b16 %v295, %v293
    %v486 = vpack.c.b16 %v296, %v294
    %v487 = vpack.c.b16 %v299, %v297
    %v488 = vpack.c.b16 %v300, %v298
    %v489 = vpack.c.b16 %v303, %v301
    %v490 = vpack.c.b16 %v304, %v302
    %v491 = vpack.c.b16 %v307, %v305
    %v492 = vpack.c.b16 %v308, %v306
    %v493 = vpack.c.b16 %v311, %v309
    %v494 = vpack.c.b16 %v312, %v310
    %v495 = vpack.c.b16 %v315, %v313
    %v496 = vpack.c.b16 %v316, %v314
    %v497 = vpack.c.b16 %v319, %v317
    %v498 = vpack.c.b16 %v320, %v318
    %v499 = vpack.c.b16 %v323, %v321
    %v500 = vpack.c.b16 %v324, %v322
    %v501 = vpack.c.b16 %v327, %v325
    %v502 = vpack.c.b16 %v328, %v326
    %v503 = vpack.c.b16 %v331, %v329
    %v504 = vpack.c.b16 %v332, %v330
    %v505 = vpack.c.b16 %v335, %v333
    %v506 = vpack.c.b16 %v336, %v334
    %v507 = vpack.c.b16 %v339, %v337
    %v508 = vpack.c.b16 %v340, %v338
    %v509 = vpack.c.b16 %v343, %v341
    %v510 = vpack.c.b16 %v344, %v342
    %v511 = vpack.c.b16 %v347, %v345
    %v512 = vpack.c.b16 %v348, %v346
    %v513 = vpack.c.b16 %v351, %v349
    %v514 = vpack.c.b16 %v352, %v350
    %v515 = vpack.c.b16 %v355, %v353
    %v516 = vpack.c.b16 %v356, %v354
    %v517 = vpack.c.b16 %v359, %v357
    %v518 = vpack.c.b16 %v360, %v358
    %v519 = vpack.c.b16 %v363, %v361
    %v520 = vpack.c.b16 %v364, %v362
    %v521 = vpack.c.b16 %v367, %v365
    %v522 = vpack.c.b16 %v368, %v366
    %v523 = vpack.c.b16 %v371, %v369
    %v524 = vpack.c.b16 %v372, %v370
    %v525 = vpack.c.b16 %v375, %v373
    %v526 = vpack.c.b16 %v376, %v374
    %v527 = vpack.c.b16 %v379, %v377
    %v528 = vpack.c.b16 %v380, %v378
    %v529 = vpack.c.b16 %v383, %v381
    %v530 = vpack.c.b16 %v384, %v382
    %v531 = vpack.c.b16 %v387, %v385
    %v532 = vpack.c.b16 %v388, %v386
    %v533 = vpack.c.b16 %v391, %v389
    %v534 = vpack.c.b16 %v392, %v390
    %v535 = vpack.c.b16 %v395, %v393
    %v536 = vpack.c.b16 %v396, %v394
    %v537 = vpack.c.b16 %v399, %v397
    %v538 = vpack.c.b16 %v400, %v398
    %v539 = vpack.c.b16 %v403, %v401
    %v540 = vpack.c.b16 %v404, %v402
    %v541 = vpack.c.b16 %v407, %v405
    %v542 = vpack.c.b16 %v408, %v406
    %v543 = vpack.c.b16 %v411, %v409
    %v544 = vpack.c.b16 %v412, %v410
    %v545 = vpack.c.b16 %v415, %v413
    %v546 = vpack.c.b16 %v416, %v414
    %v547 = vpack.c.b16 %v419, %v417
    %v548 = vpack.c.b16 %v420, %v418
    %v549 = vpack.c.b16 %v423, %v421
    %v550 = vpack.c.b16 %v424, %v422
    %v551 = vpack.c.b16 %v427, %v425
    %v552 = vpack.c.b16 %v428, %v426
    %v553 = vpack.c.b16 %v431, %v429
    %v554 = vpack.c.b16 %v432, %v430
    %v555 = vpack.c.b16 %v435, %v433
    %v556 = vpack.c.b16 %v436, %v434
    %v557 = vpack.c.b16 %v439, %v437
    %v558 = vpack.c.b16 %v440, %v438
    %v559 = vpack.c.b16 %v443, %v441
    %v560 = vpack.c.b16 %v444, %v442
    %v561 = vpack.c.b16 %v447, %v445
    %v562 = vpack.c.b16 %v448, %v446
    %v563 = vpack.c.b16 %v451, %v449
    %v564 = vpack.c.b16 %v452, %v450
    %v565 = vpack.c.b16 %v455, %v453
    %v566 = vpack.c.b16 %v456, %v454
    %v567 = vpack.c.b16 %v459, %v457
    %v568 = vpack.c.b16 %v460, %v458
    %v569 = vpack.c.b16 %v463, %v461
    %v570 = vpack.c.b16 %v464, %v462
    %v571 = vpack.c.b16 %v467, %v465
    %v572 = vpack.c.b16 %v468, %v466
    %v573 = vpack.c.b16 %v471, %v469
    %v574 = vpack.c.b16 %v472, %v470
    %v575 = vpack.c.b16 %v475, %v473
    %v576 = vpack.c.b16 %v476, %v474
    %v577 = vpack.c.b16 %v479, %v477
    %v578 = vpack.c.b16 %v480, %v478
    %v579 = vpack.c.b16 %v483, %v481
    %v580 = vpack.c.b16 %v484, %v482
    %677 = vmatprep.subr.bf16.mxu0 %v486
    %678 = vmatpush1.bf16.msra.mxu0 %v485
    %679 = vmatprep.subr.bf16.mxu0 %v488
    %680 = vmatpush1.bf16.msra.mxu0 %v487
    %681 = vmatprep.subr.bf16.mxu0 %v490
    %682 = vmatpush1.bf16.msra.mxu0 %v489
    %683 = vmatprep.subr.bf16.mxu0 %v492
    %684 = vmatpush1.bf16.msra.mxu0 %v491
    %685 = vmatprep.subr.bf16.mxu0 %v494
    %686 = vmatpush1.bf16.msra.mxu0 %v493
    %687 = vmatprep.subr.bf16.mxu0 %v496
    %688 = vmatpush1.bf16.msra.mxu0 %v495
    %689 = vmatprep.subr.bf16.mxu0 %v498
    %690 = vmatpush1.bf16.msra.mxu0 %v497
    %691 = vmatprep.subr.bf16.mxu0 %v500
    %692 = vmatpush1.bf16.msra.mxu0 %v499
    %693 = vmatprep.subr.bf16.mxu0 %v502
    %694 = vmatpush1.bf16.msra.mxu0 %v501
    %695 = vmatprep.subr.bf16.mxu0 %v504
    %696 = vmatpush1.bf16.msra.mxu0 %v503
    %697 = vmatprep.subr.bf16.mxu0 %v506
    %698 = vmatpush1.bf16.msra.mxu0 %v505
    %699 = vmatprep.subr.bf16.mxu0 %v508
    %700 = vmatpush1.bf16.msra.mxu0 %v507
    %701 = vmatprep.subr.bf16.mxu0 %v510
    %702 = vmatpush1.bf16.msra.mxu0 %v509
    %703 = vmatprep.subr.bf16.mxu0 %v512
    %704 = vmatpush1.bf16.msra.mxu0 %v511
    %705 = vmatprep.subr.bf16.mxu0 %v514
    %706 = vmatpush1.bf16.msra.mxu0 %v513
    %707 = vmatprep.subr.bf16.mxu0 %v516
    %708 = vmatpush1.bf16.msra.mxu0 %v515
    %709 = vmatprep.mubr.bf16.mxu0 %v84
    %710 = vmatmul.mubr.bf16.gmra.mrb[0].mxu0 %v83
    %v711 = vpop.f32.mrb[0].mxu0
    %v712 = vadd.f32 %v190, %v711
    %v713 = vpop.f32.mrb[0].mxu0
    %v714 = vadd.f32 %v194, %v713
    %v715 = vpop.f32.mrb[0].mxu0
    %v716 = vpop.f32.mrb[0].mxu0
    %717 = vdwg.mxu0
    %718 = vmatprep.subr.bf16.mxu0 %v518
    %719 = vmatpush1.bf16.msra.mxu0 %v517
    %720 = vmatprep.subr.bf16.mxu0 %v520
    %721 = vmatpush1.bf16.msra.mxu0 %v519
    %722 = vmatprep.subr.bf16.mxu0 %v522
    %723 = vmatpush1.bf16.msra.mxu0 %v521
    %724 = vmatprep.subr.bf16.mxu0 %v524
    %725 = vmatpush1.bf16.msra.mxu0 %v523
    %726 = vmatprep.subr.bf16.mxu0 %v526
    %727 = vmatpush1.bf16.msra.mxu0 %v525
    %728 = vmatprep.subr.bf16.mxu0 %v528
    %729 = vmatpush1.bf16.msra.mxu0 %v527
    %730 = vmatprep.subr.bf16.mxu0 %v530
    %731 = vmatpush1.bf16.msra.mxu0 %v529
    %732 = vmatprep.subr.bf16.mxu0 %v532
    %733 = vmatpush1.bf16.msra.mxu0 %v531
    %734 = vmatprep.subr.bf16.mxu0 %v534
    %735 = vmatpush1.bf16.msra.mxu0 %v533
    %736 = vmatprep.subr.bf16.mxu0 %v536
    %737 = vmatpush1.bf16.msra.mxu0 %v535
    %738 = vmatprep.subr.bf16.mxu0 %v538
    %739 = vmatpush1.bf16.msra.mxu0 %v537
    %740 = vmatprep.subr.bf16.mxu0 %v540
    %741 = vmatpush1.bf16.msra.mxu0 %v539
    %742 = vmatprep.subr.bf16.mxu0 %v542
    %743 = vmatpush1.bf16.msra.mxu0 %v541
    %744 = vmatprep.subr.bf16.mxu0 %v544
    %745 = vmatpush1.bf16.msra.mxu0 %v543
    %746 = vmatprep.subr.bf16.mxu0 %v546
    %747 = vmatpush1.bf16.msra.mxu0 %v545
    %748 = vmatprep.subr.bf16.mxu0 %v548
    %749 = vmatpush1.bf16.msra.mxu0 %v547
    %750 = vmatprep.mubr.bf16.mxu0 %v86
    %751 = vmatmul.mubr.bf16.gmra.mrb[0].mxu0 %v85
    %v752 = vpop.f32.mrb[0].mxu0
    %v753 = vadd.f32 %v712, %v752
    %v754 = vpop.f32.mrb[0].mxu0
    %v755 = vadd.f32 %v714, %v754
    %v756 = vpop.f32.mrb[0].mxu0
    %v757 = vpop.f32.mrb[0].mxu0
    %758 = vdwg.mxu0
    %759 = vmatprep.subr.bf16.mxu0 %v550
    %760 = vmatpush1.bf16.msra.mxu0 %v549
    %761 = vmatprep.subr.bf16.mxu0 %v552
    %762 = vmatpush1.bf16.msra.mxu0 %v551
    %763 = vmatprep.subr.bf16.mxu0 %v554
    %764 = vmatpush1.bf16.msra.mxu0 %v553
    %765 = vmatprep.subr.bf16.mxu0 %v556
    %766 = vmatpush1.bf16.msra.mxu0 %v555
    %767 = vmatprep.subr.bf16.mxu0 %v558
    %768 = vmatpush1.bf16.msra.mxu0 %v557
    %769 = vmatprep.subr.bf16.mxu0 %v560
    %770 = vmatpush1.bf16.msra.mxu0 %v559
    %771 = vmatprep.subr.bf16.mxu0 %v562
    %772 = vmatpush1.bf16.msra.mxu0 %v561
    %773 = vmatprep.subr.bf16.mxu0 %v564
    %774 = vmatpush1.bf16.msra.mxu0 %v563
    %775 = vmatprep.subr.bf16.mxu0 %v566
    %776 = vmatpush1.bf16.msra.mxu0 %v565
    %777 = vmatprep.subr.bf16.mxu0 %v568
    %778 = vmatpush1.bf16.msra.mxu0 %v567
    %779 = vmatprep.subr.bf16.mxu0 %v570
    %780 = vmatpush1.bf16.msra.mxu0 %v569
    %781 = vmatprep.subr.bf16.mxu0 %v572
    %782 = vmatpush1.bf16.msra.mxu0 %v571
    %783 = vmatprep.subr.bf16.mxu0 %v574
    %784 = vmatpush1.bf16.msra.mxu0 %v573
    %785 = vmatprep.subr.bf16.mxu0 %v576
    %786 = vmatpush1.bf16.msra.mxu0 %v575
    %787 = vmatprep.subr.bf16.mxu0 %v578
    %788 = vmatpush1.bf16.msra.mxu0 %v577
    %789 = vmatprep.subr.bf16.mxu0 %v580
    %790 = vmatpush1.bf16.msra.mxu0 %v579
    %791 = vmatprep.mubr.bf16.mxu0 %v88
    %792 = vmatmul.mubr.bf16.gmra.mrb[0].mxu0 %v87
    %v793 = vpop.f32.mrb[0].mxu0
    %v794 = vadd.f32 %v753, %v793
    %v795 = vpop.f32.mrb[0].mxu0
    %v796 = vadd.f32 %v755, %v795
    %v797 = vpop.f32.mrb[0].mxu0
    %v798 = vpop.f32.mrb[0].mxu0
    %799 = vdwg.mxu0
    %v800 = vmax.f32 %v794, 0.0
    %v801 = vmax.f32 %v796, 0.0
    %v802 = vpack.c.bf16 %v800, %v800
    %v803 = vpack.c.bf16 %v801, %v801
    %v804 = vld [vmem:[%s3] sm:$0xf]
    %v805 = vld [vmem:[%s3 + $0x4] sm:$0xf]
    %v806 = vld [vmem:[%s3 + $0x8] sm:$0xf]
    %v807 = vld [vmem:[%s3 + $0xc] sm:$0xf]
    %v808 = vld [vmem:[%s3 + $0x10] sm:$0xf]
    %v809 = vld [vmem:[%s3 + $0x14] sm:$0xf]
    %v810 = vld [vmem:[%s3 + $0x18] sm:$0xf]
    %v811 = vld [vmem:[%s3 + $0x1c] sm:$0xf]
    %v812 = vld [vmem:[%s3 + $0x20] sm:$0xf]
    %v813 = vld [vmem:[%s3 + $0x24] sm:$0xf]
    %v814 = vld [vmem:[%s3 + $0x28] sm:$0xf]
    %v815 = vld [vmem:[%s3 + $0x2c] sm:$0xf]
    %v816 = vld [vmem:[%s3 + $0x30] sm:$0xf]
    %v817 = vld [vmem:[%s3 + $0x34] sm:$0xf]
    %v818 = vld [vmem:[%s3 + $0x38] sm:$0xf]
    %v819 = vld [vmem:[%s3 + $0x3c] sm:$0xf]
    %v820 = vld [vmem:[%s3 + $0x40] sm:$0xf]
    %v821 = vld [vmem:[%s3 + $0x44] sm:$0xf]
    %v822 = vld [vmem:[%s3 + $0x48] sm:$0xf]
    %v823 = vld [vmem:[%s3 + $0x4c] sm:$0xf]
    %v824 = vld [vmem:[%s3 + $0x50] sm:$0xf]
    %v825 = vld [vmem:[%s3 + $0x54] sm:$0xf]
    %v826 = vld [vmem:[%s3 + $0x58] sm:$0xf]
    %v827 = vld [vmem:[%s3 + $0x5c] sm:$0xf]
    %v828 = vld [vmem:[%s3 + $0x60] sm:$0xf]
    %v829 = vld [vmem:[%s3 + $0x64] sm:$0xf]
    %v830 = vld [vmem:[%s3 + $0x68] sm:$0xf]
    %v831 = vld [vmem:[%s3 + $0x6c] sm:$0xf]
    %v832 = vld [vmem:[%s3 + $0x70] sm:$0xf]
    %v833 = vld [vmem:[%s3 + $0x74] sm:$0xf]
    %v834 = vld [vmem:[%s3 + $0x78] sm:$0xf]
    %v835 = vld [vmem:[%s3 + $0x7c] sm:$0xf]
    %v836 = vld [vmem:[%s4] sm:$0x1]
    %v838 = vlaneseq
    %v839 = vshrl.u32 %v838, 7
    %v840 = vsub.s32 0, %v839
    %v841 = vrot.slane %v836, %v840
    %v875 = vunpack.c.l.b16 %v804
    %v876 = vunpack.c.l.b16 %v805
    %v877 = vunpack.c.l.b16 %v806
    %v878 = vunpack.c.l.b16 %v807
    %v879 = vunpack.c.l.b16 %v808
    %v880 = vunpack.c.l.b16 %v809
    %v881 = vunpack.c.l.b16 %v810
    %v882 = vunpack.c.l.b16 %v811
    %v883 = vunpack.c.l.b16 %v812
    %v884 = vunpack.c.l.b16 %v813
    %v885 = vunpack.c.l.b16 %v814
    %v886 = vunpack.c.l.b16 %v815
    %v887 = vunpack.c.l.b16 %v816
    %v888 = vunpack.c.l.b16 %v817
    %v889 = vunpack.c.l.b16 %v818
    %v890 = vunpack.c.l.b16 %v819
    %v891 = vunpack.c.l.b16 %v820
    %v892 = vunpack.c.l.b16 %v821
    %v893 = vunpack.c.l.b16 %v822
    %v894 = vunpack.c.l.b16 %v823
    %v895 = vunpack.c.l.b16 %v824
    %v896 = vunpack.c.l.b16 %v825
    %v897 = vunpack.c.l.b16 %v826
    %v898 = vunpack.c.l.b16 %v827
    %v899 = vunpack.c.l.b16 %v828
    %v900 = vunpack.c.l.b16 %v829
    %v901 = vunpack.c.l.b16 %v830
    %v902 = vunpack.c.l.b16 %v831
    %v903 = vunpack.c.l.b16 %v832
    %v904 = vunpack.c.l.b16 %v833
    %v905 = vunpack.c.l.b16 %v834
    %v906 = vunpack.c.l.b16 %v835
    %v907 = vpack.c.b16 %v876, %v875
    %v908 = vpack.c.b16 %v878, %v877
    %v909 = vpack.c.b16 %v880, %v879
    %v910 = vpack.c.b16 %v882, %v881
    %v911 = vpack.c.b16 %v884, %v883
    %v912 = vpack.c.b16 %v886, %v885
    %v913 = vpack.c.b16 %v888, %v887
    %v914 = vpack.c.b16 %v890, %v889
    %v915 = vpack.c.b16 %v892, %v891
    %v916 = vpack.c.b16 %v894, %v893
    %v917 = vpack.c.b16 %v896, %v895
    %v918 = vpack.c.b16 %v898, %v897
    %v919 = vpack.c.b16 %v900, %v899
    %v920 = vpack.c.b16 %v902, %v901
    %v921 = vpack.c.b16 %v904, %v903
    %v922 = vpack.c.b16 %v906, %v905
    %939 = vmatprep.subr.bf16.mxu0 0
    %940 = vmatpush1.bf16.msra.mxu0 %v907
    %941 = vmatprep.subr.bf16.mxu0 0
    %942 = vmatpush1.bf16.msra.mxu0 %v908
    %943 = vmatprep.subr.bf16.mxu0 0
    %944 = vmatpush1.bf16.msra.mxu0 %v909
    %945 = vmatprep.subr.bf16.mxu0 0
    %946 = vmatpush1.bf16.msra.mxu0 %v910
    %947 = vmatprep.subr.bf16.mxu0 0
    %948 = vmatpush1.bf16.msra.mxu0 %v911
    %949 = vmatprep.subr.bf16.mxu0 0
    %950 = vmatpush1.bf16.msra.mxu0 %v912
    %951 = vmatprep.subr.bf16.mxu0 0
    %952 = vmatpush1.bf16.msra.mxu0 %v913
    %953 = vmatprep.subr.bf16.mxu0 0
    %954 = vmatpush1.bf16.msra.mxu0 %v914
    %955 = vmatprep.subr.bf16.mxu0 0
    %956 = vmatpush1.bf16.msra.mxu0 %v915
    %957 = vmatprep.subr.bf16.mxu0 0
    %958 = vmatpush1.bf16.msra.mxu0 %v916
    %959 = vmatprep.subr.bf16.mxu0 0
    %960 = vmatpush1.bf16.msra.mxu0 %v917
    %961 = vmatprep.subr.bf16.mxu0 0
    %962 = vmatpush1.bf16.msra.mxu0 %v918
    %963 = vmatprep.subr.bf16.mxu0 0
    %964 = vmatpush1.bf16.msra.mxu0 %v919
    %965 = vmatprep.subr.bf16.mxu0 0
    %966 = vmatpush1.bf16.msra.mxu0 %v920
    %967 = vmatprep.subr.bf16.mxu0 0
    %968 = vmatpush1.bf16.msra.mxu0 %v921
    %969 = vmatprep.subr.bf16.mxu0 0
    %970 = vmatpush1.bf16.msra.mxu0 %v922
    %971 = vmatprep.mubr.bf16.mxu0 %v803
    %972 = vmatmul.mubr.bf16.gmra.mrb[0].mxu0 %v802
    %v973 = vpop.f32.mrb[0].mxu0
    %v974 = vadd.f32 %v841, %v973
    %v975 = vpop.f32.mrb[0].mxu0
    %v976 = vpop.f32.mrb[0].mxu0
    %v977 = vpop.f32.mrb[0].mxu0
    %978 = vdwg.mxu0
    %v979 = vmax.f32 %v974, 0.0
    %v980 = vpack.c.bf16 %v979, %v979
    %v981 = vld [vmem:[%s5] sm:$0xf]
    %v982 = vld [vmem:[%s5 + $0x4] sm:$0xf]
    %v983 = vld [vmem:[%s5 + $0x8] sm:$0xf]
    %v984 = vld [vmem:[%s5 + $0xc] sm:$0xf]
    %v985 = vld [vmem:[%s5 + $0x10] sm:$0xf]
    %v986 = vld [vmem:[%s5 + $0x14] sm:$0xf]
    %v987 = vld [vmem:[%s5 + $0x18] sm:$0xf]
    %v988 = vld [vmem:[%s5 + $0x1c] sm:$0xf]
    %v989 = vld [vmem:[%s5 + $0x20] sm:$0xf]
    %v990 = vld [vmem:[%s5 + $0x24] sm:$0xf]
    %v991 = vld [vmem:[%s5 + $0x28] sm:$0xf]
    %v992 = vld [vmem:[%s5 + $0x2c] sm:$0xf]
    %v993 = vld [vmem:[%s5 + $0x30] sm:$0xf]
    %v994 = vld [vmem:[%s5 + $0x34] sm:$0xf]
    %v995 = vld [vmem:[%s5 + $0x38] sm:$0xf]
    %v996 = vld [vmem:[%s5 + $0x3c] sm:$0xf]
    %v997 = vld [vmem:[%s6] sm:$0x1]
    %v999 = vlaneseq
    %v1000 = vshrl.u32 %v999, 7
    %v1001 = vsub.s32 0, %v1000
    %v1002 = vrot.slane %v997, %v1001
    %v1020 = vunpack.c.l.b16 %v981
    %v1021 = vunpack.c.l.b16 %v982
    %v1022 = vunpack.c.l.b16 %v983
    %v1023 = vunpack.c.l.b16 %v984
    %v1024 = vunpack.c.l.b16 %v985
    %v1025 = vunpack.c.l.b16 %v986
    %v1026 = vunpack.c.l.b16 %v987
    %v1027 = vunpack.c.l.b16 %v988
    %v1028 = vunpack.c.l.b16 %v989
    %v1029 = vunpack.c.l.b16 %v990
    %v1030 = vunpack.c.l.b16 %v991
    %v1031 = vunpack.c.l.b16 %v992
    %v1032 = vunpack.c.l.b16 %v993
    %v1033 = vunpack.c.l.b16 %v994
    %v1034 = vunpack.c.l.b16 %v995
    %v1035 = vunpack.c.l.b16 %v996
    %v1036 = vpack.c.b16 %v1021, %v1020
    %v1037 = vpack.c.b16 %v1023, %v1022
    %v1038 = vpack.c.b16 %v1025, %v1024
    %v1039 = vpack.c.b16 %v1027, %v1026
    %v1040 = vpack.c.b16 %v1029, %v1028
    %v1041 = vpack.c.b16 %v1031, %v1030
    %v1042 = vpack.c.b16 %v1033, %v1032
    %v1043 = vpack.c.b16 %v1035, %v1034
    %1052 = vmatprep.subr.bf16.mxu0 0
    %1053 = vmatpush1.bf16.msra.mxu0 %v1036
    %1054 = vmatprep.subr.bf16.mxu0 0
    %1055 = vmatpush1.bf16.msra.mxu0 %v1037
    %1056 = vmatprep.subr.bf16.mxu0 0
    %1057 = vmatpush1.bf16.msra.mxu0 %v1038
    %1058 = vmatprep.subr.bf16.mxu0 0
    %1059 = vmatpush1.bf16.msra.mxu0 %v1039
    %1060 = vmatprep.subr.bf16.mxu0 0
    %1061 = vmatpush1.bf16.msra.mxu0 %v1040
    %1062 = vmatprep.subr.bf16.mxu0 0
    %1063 = vmatpush1.bf16.msra.mxu0 %v1041
    %1064 = vmatprep.subr.bf16.mxu0 0
    %1065 = vmatpush1.bf16.msra.mxu0 %v1042
    %1066 = vmatprep.subr.bf16.mxu0 0
    %1067 = vmatpush1.bf16.msra.mxu0 %v1043
    %1068 = vmatprep.subr.bf16.mxu0 0
    %1069 = vmatpush1.bf16.msra.mxu0 0
    %1070 = vmatprep.subr.bf16.mxu0 0
    %1071 = vmatpush1.bf16.msra.mxu0 0
    %1072 = vmatprep.subr.bf16.mxu0 0
    %1073 = vmatpush1.bf16.msra.mxu0 0
    %1074 = vmatprep.subr.bf16.mxu0 0
    %1075 = vmatpush1.bf16.msra.mxu0 0
    %1076 = vmatprep.subr.bf16.mxu0 0
    %1077 = vmatpush1.bf16.msra.mxu0 0
    %1078 = vmatprep.subr.bf16.mxu0 0
    %1079 = vmatpush1.bf16.msra.mxu0 0
    %1080 = vmatprep.subr.bf16.mxu0 0
    %1081 = vmatpush1.bf16.msra.mxu0 0
    %1082 = vmatprep.subr.bf16.mxu0 0
    %1083 = vmatpush1.bf16.msra.mxu0 0
    %1084 = vmatprep.mubr.bf16.mxu0 0
    %1085 = vmatmul.mubr.bf16.gmra.mrb[0].mxu0 %v980
    %v1086 = vpop.f32.mrb[0].mxu0
    %v1087 = vadd.f32 %v1002, %v1086
    %v1088 = vpop.f32.mrb[0].mxu0
    %v1089 = vpop.f32.mrb[0].mxu0
    %v1090 = vpop.f32.mrb[0].mxu0
    %1091 = vdwg.mxu0
    %v1092 = vmax.f32 %v1087, 0.0
    %v1093 = vpack.c.bf16 %v1092, %v1092
    %v1094 = vld [vmem:[%s7] sm:$0xf]
    %v1095 = vld [vmem:[%s7 + $0x4] sm:$0xf]
    %v1096 = vld [vmem:[%s7 + $0x8] sm:$0xf]
    %v1097 = vld [vmem:[%s7 + $0xc] sm:$0xf]
    %v1098 = vld [vmem:[%s7 + $0x10] sm:$0xf]
    %v1099 = vld [vmem:[%s7 + $0x14] sm:$0xf]
    %v1100 = vld [vmem:[%s7 + $0x18] sm:$0xf]
    %v1101 = vld [vmem:[%s7 + $0x1c] sm:$0xf]
    %v1102 = vld [vmem:[%s8] sm:$0x1]
    %v1104 = vlaneseq
    %v1105 = vshrl.u32 %v1104, 7
    %v1106 = vsub.s32 0, %v1105
    %v1107 = vrot.slane %v1102, %v1106
    %v1117 = vunpack.c.l.b16 %v1094
    %v1118 = vunpack.c.l.b16 %v1095
    %v1119 = vunpack.c.l.b16 %v1096
    %v1120 = vunpack.c.l.b16 %v1097
    %v1121 = vunpack.c.l.b16 %v1098
    %v1122 = vunpack.c.l.b16 %v1099
    %v1123 = vunpack.c.l.b16 %v1100
    %v1124 = vunpack.c.l.b16 %v1101
    %v1125 = vpack.c.b16 %v1118, %v1117
    %v1126 = vpack.c.b16 %v1120, %v1119
    %v1127 = vpack.c.b16 %v1122, %v1121
    %v1128 = vpack.c.b16 %v1124, %v1123
    %vm1133 = vcmask 523264
    %v1135 = vsel %vm1133, %v1093, 0
    %1137 = vmatprep.subr.bf16.mxu0 0
    %1138 = vmatpush1.bf16.msra.mxu0 %v1125
    %1139 = vmatprep.subr.bf16.mxu0 0
    %1140 = vmatpush1.bf16.msra.mxu0 %v1126
    %1141 = vmatprep.subr.bf16.mxu0 0
    %1142 = vmatpush1.bf16.msra.mxu0 %v1127
    %1143 = vmatprep.subr.bf16.mxu0 0
    %1144 = vmatpush1.bf16.msra.mxu0 %v1128
    %1145 = vmatprep.subr.bf16.mxu0 0
    %1146 = vmatpush1.bf16.msra.mxu0 0
    %1147 = vmatprep.subr.bf16.mxu0 0
    %1148 = vmatpush1.bf16.msra.mxu0 0
    %1149 = vmatprep.subr.bf16.mxu0 0
    %1150 = vmatpush1.bf16.msra.mxu0 0
    %1151 = vmatprep.subr.bf16.mxu0 0
    %1152 = vmatpush1.bf16.msra.mxu0 0
    %1153 = vmatprep.subr.bf16.mxu0 0
    %1154 = vmatpush1.bf16.msra.mxu0 0
    %1155 = vmatprep.subr.bf16.mxu0 0
    %1156 = vmatpush1.bf16.msra.mxu0 0
    %1157 = vmatprep.subr.bf16.mxu0 0
    %1158 = vmatpush1.bf16.msra.mxu0 0
    %1159 = vmatprep.subr.bf16.mxu0 0
    %1160 = vmatpush1.bf16.msra.mxu0 0
    %1161 = vmatprep.subr.bf16.mxu0 0
    %1162 = vmatpush1.bf16.msra.mxu0 0
    %1163 = vmatprep.subr.bf16.mxu0 0
    %1164 = vmatpush1.bf16.msra.mxu0 0
    %1165 = vmatprep.subr.bf16.mxu0 0
    %1166 = vmatpush1.bf16.msra.mxu0 0
    %1167 = vmatprep.subr.bf16.mxu0 0
    %1168 = vmatpush1.bf16.msra.mxu0 0
    %1169 = vmatprep.mubr.bf16.mxu0 0
    %1170 = vmatmul.mubr.bf16.gmra.mrb[0].mxu0 %v1135
    %v1171 = vpop.f32.mrb[0].mxu0
    %v1172 = vadd.f32 %v1107, %v1171
    %v1173 = vpop.f32.mrb[0].mxu0
    %v1174 = vpop.f32.mrb[0].mxu0
    %v1175 = vpop.f32.mrb[0].mxu0
    %1176 = vdwg.mxu0
    %vm1177 = vcmask 41984
    %1178 = vst.msk [vmem:[#allocation5] sm:$0x3] %vm1177, %v1172
    // Predicated region
    $region42: #{classifier_forward.1} parent=1 // pred_check
      _
    $region43: #{classifier_forward.1} parent=1 // pred_check_branch
      %1180 = sbr.rel (0) target = $region45
    $region44: #{classifier_forward.1} parent=1 // pred_region
      %s1182 = ssub.s32 32, 32
      %1183 = vsyncadd [#allocation4], %s1182
      %s1185 = sshll.u32 [#allocation5], 4
      %s1186 = int_to_ptr.vmem [resolvable:$true] %s1185
      %1188 = dma.vmem_to_hbm [thread:$0]  %s1186, 32, %s9, [#allocation4]
    $region45: #{classifier_forward.1} parent=1 // pred_fallthru
      _
    // Predicated region
    $region46: #{classifier_forward.1} parent=1 // pred_check
      _
    $region47: #{classifier_forward.1} parent=1 // pred_check_branch
      %1190 = sbr.rel (0) target = $region49
    $region48: #{classifier_forward.1} parent=1 // pred_region
      %1191 = dma.done [#allocation4], 32
    $region49: #{classifier_forward.1} parent=1 // pred_fallthru
      _
    %1192 = vsyncpa [#allocation3], 1
    %1193 = vsyncpa [#allocation4], 1

</llo_original>
